<compile_context>
chip_gen: v5e
topology: v5e:2x2
jax: 0.10.0
libtpu: 0.0.40
codegen_flags: <defaults>
</compile_context>

<pallas_src>
import jax
import jax.numpy as jnp
from jax import lax
from jax.experimental import pallas as pl
from jax.experimental.pallas import tpu as pltpu


def _make_decoder_kernel(c_in, c2, c_up, c_out, L1, L2, src0, dst0, copy_len):
    """Fused upsample -> cat_ -> conv1+GELU -> conv2+GELU for one batch element."""
    up_len = 2 * L1
    Lf = L2 + 4          # frame length = L2 + conv(k=5) halo (2 each side)
    KU, K = 6, 5
    bf16 = jnp.bfloat16
    cc = c2 + c_up       # conv1 input channels (torch.cat([x2, up], dim=1))

    def kernel(x1d_ref, x2_ref, wup_ref, w1_ref, b1_ref, w2_ref, b2_ref,
               o_ref, cat_ref, z_ref, stku_ref, stk1_ref, stk2_ref):
        # ---- upsample: ConvTranspose1d(k=6, s=2, p=2, bias=False) -------------
        # dense conv over the zero-dilated x1; K taps folded into ONE matmul
        # with contraction 6*c_in (bf16 operands, f32 accumulate).
        for k in range(KU):                                   # static unroll
            stku_ref[k * c_in:(k + 1) * c_in, :] = x1d_ref[0, :, k:k + up_len]
        up = jnp.dot(wup_ref[...], stku_ref[...],
                     preferred_element_type=jnp.float32)      # (c_up, up_len) f32

        # ---- cat_([x2, up]) frame with conv1 halo, entirely in VMEM -----------
        # x2 rows: zero only the 2-lane halo strips, one dense data store.
        cat_ref[0:c2, 0:2] = jnp.zeros((c2, 2), bf16)
        cat_ref[0:c2, L2 + 2:Lf] = jnp.zeros((c2, 2), bf16)
        cat_ref[0:c2, 2:L2 + 2] = x2_ref[0].astype(bf16)
        # up rows: cat_'s length pad (or crop) fused here; zero only the borders.
        left = 2 + dst0
        right = left + copy_len
        cat_ref[c2:cc, 0:left] = jnp.zeros((c_up, left), bf16)
        cat_ref[c2:cc, right:Lf] = jnp.zeros((c_up, Lf - right), bf16)
        cat_ref[c2:cc, left:right] = up[:, src0:src0 + copy_len].astype(bf16)

        # ---- conv1 (k=5, p=2) + bias + GELU: ONE folded matmul ----------------
        for k in range(K):
            stk1_ref[k * cc:(k + 1) * cc, :] = cat_ref[:, k:k + L2]
        z = jnp.dot(w1_ref[...], stk1_ref[...],
                    preferred_element_type=jnp.float32)       # (c_out, L2) f32
        z = jax.nn.gelu(z + b1_ref[...], approximate=True)
        z_ref[:, 0:2] = jnp.zeros((c_out, 2), bf16)
        z_ref[:, L2 + 2:Lf] = jnp.zeros((c_out, 2), bf16)
        z_ref[:, 2:L2 + 2] = z.astype(bf16)

        # ---- conv2 (k=5, p=2) + bias + GELU: ONE folded matmul ----------------
        for k in range(K):
            stk2_ref[k * c_out:(k + 1) * c_out, :] = z_ref[:, k:k + L2]
        out = jnp.dot(w2_ref[...], stk2_ref[...],
                      preferred_element_type=jnp.float32)     # (c_out, L2) f32
        out = jax.nn.gelu(out + b2_ref[...], approximate=True)
        # single lane-dense store, offset 0, full L2
        o_ref[0] = out.astype(o_ref.dtype)

    return kernel


def carafe1d_decoder_forward(x1, x2, w_up, w1, b1, w2, b2):
    """CARAFE1dDecoder.forward.

    x1: (B, inplanes, L1)              x2: (B, inplanes//2, L2)
    w_up: (inplanes, inplanes//2, 6)   ConvTranspose1d weight (PyTorch layout, no bias)
    w1:  (outplanes, inplanes, 5),  b1: (outplanes,)
    w2:  (outplanes, outplanes, 5), b2: (outplanes,)
    Returns (B, outplanes, L2).
    """
    B, c_in, L1 = x1.shape
    _, c2, L2 = x2.shape
    c_up = w_up.shape[1]
    c_out = w1.shape[0]
    assert w_up.shape[0] == c_in and c2 + c_up == w1.shape[1]
    assert w2.shape[0] == c_out and w2.shape[1] == c_out

    # cat_ placement (supports both padding diff>0 and cropping diff<0)
    up_len = 2 * L1                       # (L1-1)*2 - 2*2 + 6
    diff = L2 - up_len
    dl = diff // 2                        # Python floor matches F.pad semantics
    dst0, src0 = max(dl, 0), max(-dl, 0)
    copy_len = min(L2, dl + up_len) - dst0
    assert copy_len > 0, "upsampled x1 and x2 do not overlap"

    bf16 = jnp.bfloat16
    # zero-dilated x1 (interior pad 1, edge pad 3 each side) in bf16
    # TODO(synk): even/odd phase split would avoid materializing this half-zero tensor.
    x1d = lax.pad(x1.astype(bf16), jnp.zeros((), bf16),
                  ((0, 0, 0), (0, 0, 0), (3, 3, 1)))
    L1d = x1d.shape[2]                    # 2*L1 + 5

    # Fold the K taps into the matmul contraction dim (host-side, bf16).
    # For a fixed model these fold into constants / are hoisted by XLA.
    w_eq = jnp.transpose(jnp.flip(w_up, -1), (2, 1, 0))               # (6, c_up, c_in)
    wup_f = jnp.transpose(w_eq, (1, 0, 2)).reshape(c_up, 6 * c_in).astype(bf16)
    w1_f = jnp.transpose(w1, (0, 2, 1)).reshape(c_out, 5 * (c2 + c_up)).astype(bf16)
    w2_f = jnp.transpose(w2, (0, 2, 1)).reshape(c_out, 5 * c_out).astype(bf16)
    b1c = b1.reshape(c_out, 1).astype(jnp.float32)
    b2c = b2.reshape(c_out, 1).astype(jnp.float32)

    kernel = _make_decoder_kernel(c_in, c2, c_up, c_out, L1, L2, src0, dst0, copy_len)

    in_specs = [
        pl.BlockSpec((1, c_in, L1d), lambda b: (b, 0, 0)),            # dilated x1 (bf16)
        pl.BlockSpec((1, c2, L2), lambda b: (b, 0, 0)),               # x2 (f32, unpadded)
        pl.BlockSpec((c_up, 6 * c_in), lambda b: (0, 0)),             # folded upsample W
        pl.BlockSpec((c_out, 5 * (c2 + c_up)), lambda b: (0, 0)),     # folded conv1 W
        pl.BlockSpec((c_out, 1), lambda b: (0, 0)),                   # b1
        pl.BlockSpec((c_out, 5 * c_out), lambda b: (0, 0)),           # folded conv2 W
        pl.BlockSpec((c_out, 1), lambda b: (0, 0)),                   # b2
    ]
    out_specs = pl.BlockSpec((1, c_out, L2), lambda b: (b, 0, 0))
    scratch_shapes = [
        pltpu.VMEM((c2 + c_up, L2 + 4), bf16),      # cat_ frame (halo fused)
        pltpu.VMEM((c_out, L2 + 4), bf16),          # z frame (halo fused)
        pltpu.VMEM((6 * c_in, up_len), bf16),       # stacked taps, upsample
        pltpu.VMEM((5 * (c2 + c_up), L2), bf16),    # stacked taps, conv1
        pltpu.VMEM((5 * c_out, L2), bf16),          # stacked taps, conv2
    ]

    flops = 2 * B * (c_up * up_len * 6 * c_in
                     + c_out * L2 * 5 * (c2 + c_up)
                     + c_out * L2 * 5 * c_out)
    bytes_accessed = (2 * x1d.size + 4 * x2.size
                      + 2 * (wup_f.size + w1_f.size + w2_f.size)
                      + 4 * (b1c.size + b2c.size)
                      + 4 * B * c_out * L2)
    cost = pl.CostEstimate(flops=int(flops),
                           transcendentals=int(2 * B * c_out * L2),
                           bytes_accessed=int(bytes_accessed))

    # VMEM budget: 2x (double-buffered) per-step input/output blocks + scratch,
    # with 3x headroom, capped at 64 MiB so the same setting fits v7x/v6e/v5e.
    per_step_blocks = (2 * c_in * L1d + 4 * c2 * L2
                       + 2 * (wup_f.size + w1_f.size + w2_f.size)
                       + 4 * (b1c.size + b2c.size) + 4 * c_out * L2)
    scratch_bytes = 2 * ((c2 + c_up) * (L2 + 4) + c_out * (L2 + 4)
                         + 6 * c_in * up_len + 5 * (c2 + c_up) * L2 + 5 * c_out * L2)
    vmem_limit = int(min(64 << 20, max(16 << 20,
                                       3 * (2 * per_step_blocks + scratch_bytes))))

    # TODO(synk): if B == 1, add an L-tile grid axis so v7x's 2 TensorCores both work.
    return pl.pallas_call(
        kernel,
        out_shape=jax.ShapeDtypeStruct((B, c_out, L2), x2.dtype),
        grid_spec=pltpu.PrefetchScalarGridSpec(
            num_scalar_prefetch=0,
            grid=(B,),
            in_specs=in_specs,
            out_specs=out_specs,
            scratch_shapes=scratch_shapes),
        compiler_params=pltpu.CompilerParams(
            dimension_semantics=("parallel",),
            vmem_limit_bytes=vmem_limit),
        cost_estimate=cost,
    )(x1d, x2, wup_f, w1_f, b1c, w2_f, b2c)


def _reference_forward(x1, x2, w_up, w1, b1, w2, b2):
    """Pure-JAX reference (independent formulation) of CARAFE1dDecoder.forward."""
    hp = lax.Precision.HIGHEST
    B, _, L1 = x1.shape
    c1 = w_up.shape[1]
    # ConvTranspose1d by definition: full[2l + k] += W[:, :, k]^T x[:, l]; crop p=2.
    full = jnp.zeros((B, c1, 2 * L1 + 4), x1.dtype)
    for k in range(6):
        contrib = jnp.einsum('bcl,ce->bel', x1, w_up[:, :, k], precision=hp)
        full = full.at[:, :, k:k + 2 * L1 - 1:2].add(contrib)
    up = full[:, :, 2:2 + 2 * L1]
    # cat_ (pad if x2 longer, crop if shorter)
    L2 = x2.shape[2]
    d = L2 - up.shape[2]
    l, r = d // 2, d - d // 2
    if d >= 0:
        up = jnp.pad(up, ((0, 0), (0, 0), (l, r)))
    else:
        up = up[:, :, -l:up.shape[2] + r]
    cat = jnp.concatenate([x2, up], axis=1)
    # conv1 -> gelu -> conv2 -> gelu
    dn = ('NCH', 'OIH', 'NCH')
    z = lax.conv_general_dilated(cat, w1, (1,), [(2, 2)],
                                 dimension_numbers=dn, precision=hp)
    z = jax.nn.gelu(z + b1[None, :, None], approximate=True)
    z = lax.conv_general_dilated(z, w2, (1,), [(2, 2)],
                                 dimension_numbers=dn, precision=hp)
    return jax.nn.gelu(z + b2[None, :, None], approximate=True)


if __name__ == "__main__":
    forward = jax.jit(carafe1d_decoder_forward)

    key = jax.random.PRNGKey(0)
    B, inplanes, outplanes = 2, 8, 16
    c_skip = inplanes // 2

    # L1=8: diff=0; L1=7: cat_ padding branch (diffY>0); L1=9: cat_ cropping branch.
    for (L1, L2) in [(8, 16), (7, 16), (9, 16)]:
        ks = jax.random.split(jax.random.fold_in(key, L1), 7)
        x1 = jax.random.normal(ks[0], (B, inplanes, L1), jnp.float32)
        x2 = jax.random.normal(ks[1], (B, c_skip, L2), jnp.float32)
        w_up = 0.1 * jax.random.normal(ks[2], (inplanes, inplanes // 2, 6), jnp.float32)
        w1 = 0.1 * jax.random.normal(ks[3], (outplanes, inplanes, 5), jnp.float32)
        b1 = 0.1 * jax.random.normal(ks[4], (outplanes,), jnp.float32)
        w2 = 0.1 * jax.random.normal(ks[5], (outplanes, outplanes, 5), jnp.float32)
        b2 = 0.1 * jax.random.normal(ks[6], (outplanes,), jnp.float32)

        out = jax.block_until_ready(forward(x1, x2, w_up, w1, b1, w2, b2))
        ref = _reference_forward(x1, x2, w_up, w1, b1, w2, b2)
        assert out.shape == (B, outplanes, L2), out.shape
        max_err = float(jnp.max(jnp.abs(out - ref)))
        # bf16 MXU operands vs f32 HIGHEST reference -> loosened tolerance
        assert jnp.allclose(out, ref, rtol=5e-2, atol=3e-2), f"max abs err {max_err}"

    print("KERNEL_OK")
</pallas_src>

<mosaic_0001>
module attributes {stable_mosaic.version = 11 : i64} {
  func.func @kernel(%arg0: i32, %arg1: memref<1x8x21xbf16, #tpu.memory_space<vmem>>, %arg2: memref<1x4x16xf32, #tpu.memory_space<vmem>>, %arg3: memref<4x48xbf16, #tpu.memory_space<vmem>>, %arg4: memref<16x40xbf16, #tpu.memory_space<vmem>>, %arg5: memref<16x1xf32, #tpu.memory_space<vmem>>, %arg6: memref<16x80xbf16, #tpu.memory_space<vmem>>, %arg7: memref<16x1xf32, #tpu.memory_space<vmem>>, %arg8: memref<1x16x16xf32, #tpu.memory_space<vmem>>, %arg9: memref<8x20xbf16, #tpu.memory_space<vmem>>, %arg10: memref<16x20xbf16, #tpu.memory_space<vmem>>, %arg11: memref<48x16xbf16, #tpu.memory_space<vmem>>, %arg12: memref<40x16xbf16, #tpu.memory_space<vmem>>, %arg13: memref<80x16xbf16, #tpu.memory_space<vmem>>) attributes {dimension_semantics = [#tpu.dimension_semantics<parallel>], iteration_bounds = array<i64: 2>, scalar_prefetch = 0 : i64, scratch_operands = 5 : i64, tpu.core_type = #tpu.core_type<tc>, window_params = [{transform_indices = @transform_0, window_bounds = array<i64: 1, 8, 21>}, {transform_indices = @transform_1, window_bounds = array<i64: 1, 4, 16>}, {pipeline_mode = #tpu.pipeline_mode<synchronous>, transform_indices = @transform_2, window_bounds = array<i64: 4, 48>}, {pipeline_mode = #tpu.pipeline_mode<synchronous>, transform_indices = @transform_3, window_bounds = array<i64: 16, 40>}, {pipeline_mode = #tpu.pipeline_mode<synchronous>, transform_indices = @transform_4, window_bounds = array<i64: 16, 1>}, {pipeline_mode = #tpu.pipeline_mode<synchronous>, transform_indices = @transform_5, window_bounds = array<i64: 16, 80>}, {pipeline_mode = #tpu.pipeline_mode<synchronous>, transform_indices = @transform_6, window_bounds = array<i64: 16, 1>}, {transform_indices = @transform_7, window_bounds = array<i64: 1, 16, 16>}]} {
    %c0 = arith.constant 0 : index
    %c0_0 = arith.constant 0 : index
    %c0_1 = arith.constant 0 : index
    %0 = vector.load %arg1[%c0, %c0_0, %c0_1] : memref<1x8x21xbf16, #tpu.memory_space<vmem>>, vector<1x8x16xbf16>
    %1 = vector.shape_cast %0 : vector<1x8x16xbf16> to vector<8x16xbf16>
    %c0_2 = arith.constant 0 : index
    %c0_3 = arith.constant 0 : index
    %2 = vector.load %arg11[%c0_2, %c0_3] : memref<48x16xbf16, #tpu.memory_space<vmem>>, vector<8x16xbf16>
    tpu.vector_store %arg11[%c0_2, %c0_3], %1 {strides = array<i32>} : memref<48x16xbf16, #tpu.memory_space<vmem>>, vector<8x16xbf16>,
    %c0_4 = arith.constant 0 : index
    %c0_5 = arith.constant 0 : index
    %c1 = arith.constant 1 : index
    %3 = vector.load %arg1[%c0_4, %c0_5, %c1] : memref<1x8x21xbf16, #tpu.memory_space<vmem>>, vector<1x8x16xbf16>
    %4 = vector.shape_cast %3 : vector<1x8x16xbf16> to vector<8x16xbf16>
    %c8 = arith.constant 8 : index
    %c0_6 = arith.constant 0 : index
    %5 = vector.load %arg11[%c8, %c0_6] : memref<48x16xbf16, #tpu.memory_space<vmem>>, vector<8x16xbf16>
    tpu.vector_store %arg11[%c8, %c0_6], %4 {strides = array<i32>} : memref<48x16xbf16, #tpu.memory_space<vmem>>, vector<8x16xbf16>,
    %c0_7 = arith.constant 0 : index
    %c0_8 = arith.constant 0 : index
    %c2 = arith.constant 2 : index
    %6 = vector.load %arg1[%c0_7, %c0_8, %c2] : memref<1x8x21xbf16, #tpu.memory_space<vmem>>, vector<1x8x16xbf16>
    %7 = vector.shape_cast %6 : vector<1x8x16xbf16> to vector<8x16xbf16>
    %c16 = arith.constant 16 : index
    %c0_9 = arith.constant 0 : index
    %8 = vector.load %arg11[%c16, %c0_9] : memref<48x16xbf16, #tpu.memory_space<vmem>>, vector<8x16xbf16>
    tpu.vector_store %arg11[%c16, %c0_9], %7 {strides = array<i32>} : memref<48x16xbf16, #tpu.memory_space<vmem>>, vector<8x16xbf16>,
    %c0_10 = arith.constant 0 : index
    %c0_11 = arith.constant 0 : index
    %c3 = arith.constant 3 : index
    %9 = vector.load %arg1[%c0_10, %c0_11, %c3] : memref<1x8x21xbf16, #tpu.memory_space<vmem>>, vector<1x8x16xbf16>
    %10 = vector.shape_cast %9 : vector<1x8x16xbf16> to vector<8x16xbf16>
    %c24 = arith.constant 24 : index
    %c0_12 = arith.constant 0 : index
    %11 = vector.load %arg11[%c24, %c0_12] : memref<48x16xbf16, #tpu.memory_space<vmem>>, vector<8x16xbf16>
    tpu.vector_store %arg11[%c24, %c0_12], %10 {strides = array<i32>} : memref<48x16xbf16, #tpu.memory_space<vmem>>, vector<8x16xbf16>,
    %c0_13 = arith.constant 0 : index
    %c0_14 = arith.constant 0 : index
    %c4 = arith.constant 4 : index
    %12 = vector.load %arg1[%c0_13, %c0_14, %c4] : memref<1x8x21xbf16, #tpu.memory_space<vmem>>, vector<1x8x16xbf16>
    %13 = vector.shape_cast %12 : vector<1x8x16xbf16> to vector<8x16xbf16>
    %c32 = arith.constant 32 : index
    %c0_15 = arith.constant 0 : index
    %14 = vector.load %arg11[%c32, %c0_15] : memref<48x16xbf16, #tpu.memory_space<vmem>>, vector<8x16xbf16>
    tpu.vector_store %arg11[%c32, %c0_15], %13 {strides = array<i32>} : memref<48x16xbf16, #tpu.memory_space<vmem>>, vector<8x16xbf16>,
    %c0_16 = arith.constant 0 : index
    %c0_17 = arith.constant 0 : index
    %c5 = arith.constant 5 : index
    %15 = vector.load %arg1[%c0_16, %c0_17, %c5] : memref<1x8x21xbf16, #tpu.memory_space<vmem>>, vector<1x8x16xbf16>
    %16 = vector.shape_cast %15 : vector<1x8x16xbf16> to vector<8x16xbf16>
    %c40 = arith.constant 40 : index
    %c0_18 = arith.constant 0 : index
    %17 = vector.load %arg11[%c40, %c0_18] : memref<48x16xbf16, #tpu.memory_space<vmem>>, vector<8x16xbf16>
    tpu.vector_store %arg11[%c40, %c0_18], %16 {strides = array<i32>} : memref<48x16xbf16, #tpu.memory_space<vmem>>, vector<8x16xbf16>,
    %c0_19 = arith.constant 0 : index
    %c0_20 = arith.constant 0 : index
    %18 = vector.load %arg3[%c0_19, %c0_20] : memref<4x48xbf16, #tpu.memory_space<vmem>>, vector<4x48xbf16>
    %c0_21 = arith.constant 0 : index
    %c0_22 = arith.constant 0 : index
    %19 = vector.load %arg11[%c0_21, %c0_22] : memref<48x16xbf16, #tpu.memory_space<vmem>>, vector<48x16xbf16>
    %cst = arith.constant dense<0.000000e+00> : vector<4x16xf32>
    %20 = tpu.matmul %18, %19, %cst {dimension_numbers = #tpu.dot_dimension_numbers<[1], [0], [0], [1], [0, 0, 1, 1], [], []>} : vector<4x48xbf16>, vector<48x16xbf16>, vector<4x16xf32> -> vector<4x16xf32>
    %cst_23 = arith.constant 0.000000e+00 : bf16
    %21 = vector.broadcast %cst_23 : bf16 to vector<4x2xbf16>
    %c0_24 = arith.constant 0 : index
    %c0_25 = arith.constant 0 : index
    %22 = vector.load %arg9[%c0_24, %c0_25] : memref<8x20xbf16, #tpu.memory_space<vmem>>, vector<4x2xbf16>
    tpu.vector_store %arg9[%c0_24, %c0_25], %21 {strides = array<i32>} : memref<8x20xbf16, #tpu.memory_space<vmem>>, vector<4x2xbf16>,
    %cst_26 = arith.constant 0.000000e+00 : bf16
    %23 = vector.broadcast %cst_26 : bf16 to vector<4x2xbf16>
    %c0_27 = arith.constant 0 : index
    %c18 = arith.constant 18 : index
    %24 = vector.load %arg9[%c0_27, %c18] : memref<8x20xbf16, #tpu.memory_space<vmem>>, vector<4x2xbf16>
    tpu.vector_store %arg9[%c0_27, %c18], %23 {strides = array<i32>} : memref<8x20xbf16, #tpu.memory_space<vmem>>, vector<4x2xbf16>,
    %c0_28 = arith.constant 0 : index
    %c0_29 = arith.constant 0 : index
    %c0_30 = arith.constant 0 : index
    %25 = vector.load %arg2[%c0_28, %c0_29, %c0_30] : memref<1x4x16xf32, #tpu.memory_space<vmem>>, vector<1x4x16xf32>
    %26 = vector.shape_cast %25 : vector<1x4x16xf32> to vector<4x16xf32>
    %27 = arith.truncf %26 : vector<4x16xf32> to vector<4x16xbf16>
    %c0_31 = arith.constant 0 : index
    %c2_32 = arith.constant 2 : index
    %28 = vector.load %arg9[%c0_31, %c2_32] : memref<8x20xbf16, #tpu.memory_space<vmem>>, vector<4x16xbf16>
    tpu.vector_store %arg9[%c0_31, %c2_32], %27 {strides = array<i32>} : memref<8x20xbf16, #tpu.memory_space<vmem>>, vector<4x16xbf16>,
    %cst_33 = arith.constant 0.000000e+00 : bf16
    %29 = vector.broadcast %cst_33 : bf16 to vector<4x2xbf16>
    %c4_34 = arith.constant 4 : index
    %c0_35 = arith.constant 0 : index
    %30 = vector.load %arg9[%c4_34, %c0_35] : memref<8x20xbf16, #tpu.memory_space<vmem>>, vector<4x2xbf16>
    tpu.vector_store %arg9[%c4_34, %c0_35], %29 {strides = array<i32>} : memref<8x20xbf16, #tpu.memory_space<vmem>>, vector<4x2xbf16>,
    %cst_36 = arith.constant 0.000000e+00 : bf16
    %31 = vector.broadcast %cst_36 : bf16 to vector<4x2xbf16>
    %c4_37 = arith.constant 4 : index
    %c18_38 = arith.constant 18 : index
    %32 = vector.load %arg9[%c4_37, %c18_38] : memref<8x20xbf16, #tpu.memory_space<vmem>>, vector<4x2xbf16>
    tpu.vector_store %arg9[%c4_37, %c18_38], %31 {strides = array<i32>} : memref<8x20xbf16, #tpu.memory_space<vmem>>, vector<4x2xbf16>,
    %33 = arith.truncf %20 : vector<4x16xf32> to vector<4x16xbf16>
    %c4_39 = arith.constant 4 : index
    %c2_40 = arith.constant 2 : index
    %34 = vector.load %arg9[%c4_39, %c2_40] : memref<8x20xbf16, #tpu.memory_space<vmem>>, vector<4x16xbf16>
    tpu.vector_store %arg9[%c4_39, %c2_40], %33 {strides = array<i32>} : memref<8x20xbf16, #tpu.memory_space<vmem>>, vector<4x16xbf16>,
    %c0_41 = arith.constant 0 : index
    %c0_42 = arith.constant 0 : index
    %35 = vector.load %arg9[%c0_41, %c0_42] : memref<8x20xbf16, #tpu.memory_space<vmem>>, vector<8x16xbf16>
    %c0_43 = arith.constant 0 : index
    %c0_44 = arith.constant 0 : index
    %36 = vector.load %arg12[%c0_43, %c0_44] : memref<40x16xbf16, #tpu.memory_space<vmem>>, vector<8x16xbf16>
    tpu.vector_store %arg12[%c0_43, %c0_44], %35 {strides = array<i32>} : memref<40x16xbf16, #tpu.memory_space<vmem>>, vector<8x16xbf16>,
    %c0_45 = arith.constant 0 : index
    %c1_46 = arith.constant 1 : index
    %37 = vector.load %arg9[%c0_45, %c1_46] : memref<8x20xbf16, #tpu.memory_space<vmem>>, vector<8x16xbf16>
    %c8_47 = arith.constant 8 : index
    %c0_48 = arith.constant 0 : index
    %38 = vector.load %arg12[%c8_47, %c0_48] : memref<40x16xbf16, #tpu.memory_space<vmem>>, vector<8x16xbf16>
    tpu.vector_store %arg12[%c8_47, %c0_48], %37 {strides = array<i32>} : memref<40x16xbf16, #tpu.memory_space<vmem>>, vector<8x16xbf16>,
    %c0_49 = arith.constant 0 : index
    %c2_50 = arith.constant 2 : index
    %39 = vector.load %arg9[%c0_49, %c2_50] : memref<8x20xbf16, #tpu.memory_space<vmem>>, vector<8x16xbf16>
    %c16_51 = arith.constant 16 : index
    %c0_52 = arith.constant 0 : index
    %40 = vector.load %arg12[%c16_51, %c0_52] : memref<40x16xbf16, #tpu.memory_space<vmem>>, vector<8x16xbf16>
    tpu.vector_store %arg12[%c16_51, %c0_52], %39 {strides = array<i32>} : memref<40x16xbf16, #tpu.memory_space<vmem>>, vector<8x16xbf16>,
    %c0_53 = arith.constant 0 : index
    %c3_54 = arith.constant 3 : index
    %41 = vector.load %arg9[%c0_53, %c3_54] : memref<8x20xbf16, #tpu.memory_space<vmem>>, vector<8x16xbf16>
    %c24_55 = arith.constant 24 : index
    %c0_56 = arith.constant 0 : index
    %42 = vector.load %arg12[%c24_55, %c0_56] : memref<40x16xbf16, #tpu.memory_space<vmem>>, vector<8x16xbf16>
    tpu.vector_store %arg12[%c24_55, %c0_56], %41 {strides = array<i32>} : memref<40x16xbf16, #tpu.memory_space<vmem>>, vector<8x16xbf16>,
    %c0_57 = arith.constant 0 : index
    %c4_58 = arith.constant 4 : index
    %43 = vector.load %arg9[%c0_57, %c4_58] : memref<8x20xbf16, #tpu.memory_space<vmem>>, vector<8x16xbf16>
    %c32_59 = arith.constant 32 : index
    %c0_60 = arith.constant 0 : index
    %44 = vector.load %arg12[%c32_59, %c0_60] : memref<40x16xbf16, #tpu.memory_space<vmem>>, vector<8x16xbf16>
    tpu.vector_store %arg12[%c32_59, %c0_60], %43 {strides = array<i32>} : memref<40x16xbf16, #tpu.memory_space<vmem>>, vector<8x16xbf16>,
    %c0_61 = arith.constant 0 : index
    %c0_62 = arith.constant 0 : index
    %45 = vector.load %arg4[%c0_61, %c0_62] : memref<16x40xbf16, #tpu.memory_space<vmem>>, vector<16x40xbf16>
    %c0_63 = arith.constant 0 : index
    %c0_64 = arith.constant 0 : index
    %46 = vector.load %arg12[%c0_63, %c0_64] : memref<40x16xbf16, #tpu.memory_space<vmem>>, vector<40x16xbf16>
    %cst_65 = arith.constant dense<0.000000e+00> : vector<16x16xf32>
    %47 = tpu.matmul %45, %46, %cst_65 {dimension_numbers = #tpu.dot_dimension_numbers<[1], [0], [0], [1], [0, 0, 1, 1], [], []>} : vector<16x40xbf16>, vector<40x16xbf16>, vector<16x16xf32> -> vector<16x16xf32>
    %c0_66 = arith.constant 0 : index
    %c0_67 = arith.constant 0 : index
    %48 = vector.load %arg5[%c0_66, %c0_67] : memref<16x1xf32, #tpu.memory_space<vmem>>, vector<16x1xf32>
    %49 = vector.broadcast %48 : vector<16x1xf32> to vector<16x16xf32>
    %50 = arith.addf %47, %49 : vector<16x16xf32>
    %51 = arith.mulf %50, %50 : vector<16x16xf32>
    %52 = arith.mulf %50, %51 : vector<16x16xf32>
    %cst_68 = arith.constant 4.471500e-02 : f32
    %53 = vector.broadcast %cst_68 : f32 to vector<16x16xf32>
    %54 = arith.mulf %53, %52 : vector<16x16xf32>
    %55 = arith.addf %50, %54 : vector<16x16xf32>
    %cst_69 = arith.constant 0.797884583 : f32
    %56 = vector.broadcast %cst_69 : f32 to vector<16x16xf32>
    %57 = arith.mulf %56, %55 : vector<16x16xf32>
    %58 = math.tanh %57 : vector<16x16xf32>
    %cst_70 = arith.constant 1.000000e+00 : f32
    %59 = vector.broadcast %cst_70 : f32 to vector<16x16xf32>
    %60 = arith.addf %59, %58 : vector<16x16xf32>
    %cst_71 = arith.constant 5.000000e-01 : f32
    %61 = vector.broadcast %cst_71 : f32 to vector<16x16xf32>
    %62 = arith.mulf %61, %60 : vector<16x16xf32>
    %63 = arith.mulf %50, %62 : vector<16x16xf32>
    %cst_72 = arith.constant 0.000000e+00 : bf16
    %64 = vector.broadcast %cst_72 : bf16 to vector<16x2xbf16>
    %c0_73 = arith.constant 0 : index
    %c0_74 = arith.constant 0 : index
    %65 = vector.load %arg10[%c0_73, %c0_74] : memref<16x20xbf16, #tpu.memory_space<vmem>>, vector<16x2xbf16>
    tpu.vector_store %arg10[%c0_73, %c0_74], %64 {strides = array<i32>} : memref<16x20xbf16, #tpu.memory_space<vmem>>, vector<16x2xbf16>,
    %cst_75 = arith.constant 0.000000e+00 : bf16
    %66 = vector.broadcast %cst_75 : bf16 to vector<16x2xbf16>
    %c0_76 = arith.constant 0 : index
    %c18_77 = arith.constant 18 : index
    %67 = vector.load %arg10[%c0_76, %c18_77] : memref<16x20xbf16, #tpu.memory_space<vmem>>, vector<16x2xbf16>
    tpu.vector_store %arg10[%c0_76, %c18_77], %66 {strides = array<i32>} : memref<16x20xbf16, #tpu.memory_space<vmem>>, vector<16x2xbf16>,
    %68 = arith.truncf %63 : vector<16x16xf32> to vector<16x16xbf16>
    %c0_78 = arith.constant 0 : index
    %c2_79 = arith.constant 2 : index
    %69 = vector.load %arg10[%c0_78, %c2_79] : memref<16x20xbf16, #tpu.memory_space<vmem>>, vector<16x16xbf16>
    tpu.vector_store %arg10[%c0_78, %c2_79], %68 {strides = array<i32>} : memref<16x20xbf16, #tpu.memory_space<vmem>>, vector<16x16xbf16>,
    %c0_80 = arith.constant 0 : index
    %c0_81 = arith.constant 0 : index
    %70 = vector.load %arg10[%c0_80, %c0_81] : memref<16x20xbf16, #tpu.memory_space<vmem>>, vector<16x16xbf16>
    %c0_82 = arith.constant 0 : index
    %c0_83 = arith.constant 0 : index
    %71 = vector.load %arg13[%c0_82, %c0_83] : memref<80x16xbf16, #tpu.memory_space<vmem>>, vector<16x16xbf16>
    tpu.vector_store %arg13[%c0_82, %c0_83], %70 {strides = array<i32>} : memref<80x16xbf16, #tpu.memory_space<vmem>>, vector<16x16xbf16>,
    %c0_84 = arith.constant 0 : index
    %c1_85 = arith.constant 1 : index
    %72 = vector.load %arg10[%c0_84, %c1_85] : memref<16x20xbf16, #tpu.memory_space<vmem>>, vector<16x16xbf16>
    %c16_86 = arith.constant 16 : index
    %c0_87 = arith.constant 0 : index
    %73 = vector.load %arg13[%c16_86, %c0_87] : memref<80x16xbf16, #tpu.memory_space<vmem>>, vector<16x16xbf16>
    tpu.vector_store %arg13[%c16_86, %c0_87], %72 {strides = array<i32>} : memref<80x16xbf16, #tpu.memory_space<vmem>>, vector<16x16xbf16>,
    %c0_88 = arith.constant 0 : index
    %c2_89 = arith.constant 2 : index
    %74 = vector.load %arg10[%c0_88, %c2_89] : memref<16x20xbf16, #tpu.memory_space<vmem>>, vector<16x16xbf16>
    %c32_90 = arith.constant 32 : index
    %c0_91 = arith.constant 0 : index
    %75 = vector.load %arg13[%c32_90, %c0_91] : memref<80x16xbf16, #tpu.memory_space<vmem>>, vector<16x16xbf16>
    tpu.vector_store %arg13[%c32_90, %c0_91], %74 {strides = array<i32>} : memref<80x16xbf16, #tpu.memory_space<vmem>>, vector<16x16xbf16>,
    %c0_92 = arith.constant 0 : index
    %c3_93 = arith.constant 3 : index
    %76 = vector.load %arg10[%c0_92, %c3_93] : memref<16x20xbf16, #tpu.memory_space<vmem>>, vector<16x16xbf16>
    %c48 = arith.constant 48 : index
    %c0_94 = arith.constant 0 : index
    %77 = vector.load %arg13[%c48, %c0_94] : memref<80x16xbf16, #tpu.memory_space<vmem>>, vector<16x16xbf16>
    tpu.vector_store %arg13[%c48, %c0_94], %76 {strides = array<i32>} : memref<80x16xbf16, #tpu.memory_space<vmem>>, vector<16x16xbf16>,
    %c0_95 = arith.constant 0 : index
    %c4_96 = arith.constant 4 : index
    %78 = vector.load %arg10[%c0_95, %c4_96] : memref<16x20xbf16, #tpu.memory_space<vmem>>, vector<16x16xbf16>
    %c64 = arith.constant 64 : index
    %c0_97 = arith.constant 0 : index
    %79 = vector.load %arg13[%c64, %c0_97] : memref<80x16xbf16, #tpu.memory_space<vmem>>, vector<16x16xbf16>
    tpu.vector_store %arg13[%c64, %c0_97], %78 {strides = array<i32>} : memref<80x16xbf16, #tpu.memory_space<vmem>>, vector<16x16xbf16>,
    %c0_98 = arith.constant 0 : index
    %c0_99 = arith.constant 0 : index
    %80 = vector.load %arg6[%c0_98, %c0_99] : memref<16x80xbf16, #tpu.memory_space<vmem>>, vector<16x80xbf16>
    %c0_100 = arith.constant 0 : index
    %c0_101 = arith.constant 0 : index
    %81 = vector.load %arg13[%c0_100, %c0_101] : memref<80x16xbf16, #tpu.memory_space<vmem>>, vector<80x16xbf16>
    %cst_102 = arith.constant dense<0.000000e+00> : vector<16x16xf32>
    %82 = tpu.matmul %80, %81, %cst_102 {dimension_numbers = #tpu.dot_dimension_numbers<[1], [0], [0], [1], [0, 0, 1, 1], [], []>} : vector<16x80xbf16>, vector<80x16xbf16>, vector<16x16xf32> -> vector<16x16xf32>
    %c0_103 = arith.constant 0 : index
    %c0_104 = arith.constant 0 : index
    %83 = vector.load %arg7[%c0_103, %c0_104] : memref<16x1xf32, #tpu.memory_space<vmem>>, vector<16x1xf32>
    %84 = vector.broadcast %83 : vector<16x1xf32> to vector<16x16xf32>
    %85 = arith.addf %82, %84 : vector<16x16xf32>
    %86 = arith.mulf %85, %85 : vector<16x16xf32>
    %87 = arith.mulf %85, %86 : vector<16x16xf32>
    %cst_105 = arith.constant 4.471500e-02 : f32
    %88 = vector.broadcast %cst_105 : f32 to vector<16x16xf32>
    %89 = arith.mulf %88, %87 : vector<16x16xf32>
    %90 = arith.addf %85, %89 : vector<16x16xf32>
    %cst_106 = arith.constant 0.797884583 : f32
    %91 = vector.broadcast %cst_106 : f32 to vector<16x16xf32>
    %92 = arith.mulf %91, %90 : vector<16x16xf32>
    %93 = math.tanh %92 : vector<16x16xf32>
    %cst_107 = arith.constant 1.000000e+00 : f32
    %94 = vector.broadcast %cst_107 : f32 to vector<16x16xf32>
    %95 = arith.addf %94, %93 : vector<16x16xf32>
    %cst_108 = arith.constant 5.000000e-01 : f32
    %96 = vector.broadcast %cst_108 : f32 to vector<16x16xf32>
    %97 = arith.mulf %96, %95 : vector<16x16xf32>
    %98 = arith.mulf %85, %97 : vector<16x16xf32>
    %c0_109 = arith.constant 0 : index
    %c0_110 = arith.constant 0 : index
    %c0_111 = arith.constant 0 : index
    %99 = vector.load %arg8[%c0_109, %c0_110, %c0_111] : memref<1x16x16xf32, #tpu.memory_space<vmem>>, vector<1x16x16xf32>
    %100 = vector.shape_cast %99 : vector<1x16x16xf32> to vector<16x16xf32>
    %101 = vector.shape_cast %98 : vector<16x16xf32> to vector<1x16x16xf32>
    tpu.vector_store %arg8[%c0_109, %c0_110, %c0_111], %101 {strides = array<i32>} : memref<1x16x16xf32, #tpu.memory_space<vmem>>, vector<1x16x16xf32>,
    return
  }
  func.func @transform_0(%arg0: i32) -> (i32, i32, i32) {
    %c0_i32 = arith.constant 0 : i32
    %c0_i32_0 = arith.constant 0 : i32
    %c0_i32_1 = arith.constant 0 : i32
    return %arg0, %c0_i32, %c0_i32_0 : i32, i32, i32
  }
  func.func @transform_1(%arg0: i32) -> (i32, i32, i32) {
    %c0_i32 = arith.constant 0 : i32
    %c0_i32_0 = arith.constant 0 : i32
    %c0_i32_1 = arith.constant 0 : i32
    return %arg0, %c0_i32, %c0_i32_0 : i32, i32, i32
  }
  func.func @transform_2(%arg0: i32) -> (i32, i32) {
    %c0_i32 = arith.constant 0 : i32
    %c0_i32_0 = arith.constant 0 : i32
    %c0_i32_1 = arith.constant 0 : i32
    return %c0_i32, %c0_i32_0 : i32, i32
  }
  func.func @transform_3(%arg0: i32) -> (i32, i32) {
    %c0_i32 = arith.constant 0 : i32
    %c0_i32_0 = arith.constant 0 : i32
    %c0_i32_1 = arith.constant 0 : i32
    return %c0_i32, %c0_i32_0 : i32, i32
  }
  func.func @transform_4(%arg0: i32) -> (i32, i32) {
    %c0_i32 = arith.constant 0 : i32
    %c0_i32_0 = arith.constant 0 : i32
    %c0_i32_1 = arith.constant 0 : i32
    return %c0_i32, %c0_i32_0 : i32, i32
  }
  func.func @transform_5(%arg0: i32) -> (i32, i32) {
    %c0_i32 = arith.constant 0 : i32
    %c0_i32_0 = arith.constant 0 : i32
    %c0_i32_1 = arith.constant 0 : i32
    return %c0_i32, %c0_i32_0 : i32, i32
  }
  func.func @transform_6(%arg0: i32) -> (i32, i32) {
    %c0_i32 = arith.constant 0 : i32
    %c0_i32_0 = arith.constant 0 : i32
    %c0_i32_1 = arith.constant 0 : i32
    return %c0_i32, %c0_i32_0 : i32, i32
  }
  func.func @transform_7(%arg0: i32) -> (i32, i32, i32) {
    %c0_i32 = arith.constant 0 : i32
    %c0_i32_0 = arith.constant 0 : i32
    %c0_i32_1 = arith.constant 0 : i32
    return %arg0, %c0_i32, %c0_i32_0 : i32, i32, i32
  }
}

</mosaic_0001>

<llo_original>
// kernel: carafe1d_decoder_forward.1
$region0: #{carafe1d_decoder_forward.1}
  #allocation0 [shape = 'u32[]', space=smem, size = 0x4, offset = 0x4, fixed_abs, tag = 'smem constant byte address 0x4 - core index']
  #allocation1 [shape = 'u32[72,128]{1,0:T(1,128)}', space=vmem, size = 0x9000, scoped, tag = 'internal scratch']
  #allocation2 [shape = 'bf16[8,20]{1,0:T(8,128)(2,1)}', space=vmem, size = 0x800, scoped, tag = 'scratch operand']
  #allocation3 [shape = 'bf16[16,20]{1,0:T(8,128)(2,1)}', space=vmem, size = 0x1000, scoped, tag = 'scratch operand']
  #allocation4 [shape = 'bf16[48,16]{1,0:T(8,128)(2,1)}', space=vmem, size = 0x3000, scoped, tag = 'scratch operand']
  #allocation5 [shape = 'bf16[40,16]{1,0:T(8,128)(2,1)}', space=vmem, size = 0x2800, scoped, tag = 'scratch operand']
  #allocation6 [shape = 'bf16[80,16]{1,0:T(8,128)(2,1)}', space=vmem, size = 0x5000, scoped, tag = 'scratch operand']
  %s0 = inlined_call_operand.vmem [shape: bf16[2,8,21], index: 0, kind: input, shape index: {}]
  %s1 = inlined_call_operand.vmem [shape: f32[2,4,16], index: 1, kind: input, shape index: {}]
  %s2 = inlined_call_operand.vmem [shape: bf16[4,48], index: 2, kind: input, shape index: {}]
  %s3 = inlined_call_operand.vmem [shape: bf16[16,40], index: 3, kind: input, shape index: {}]
  %s4 = inlined_call_operand.vmem [shape: f32[16,1], index: 4, kind: input, shape index: {}]
  %s5 = inlined_call_operand.vmem [shape: bf16[16,80], index: 5, kind: input, shape index: {}]
  %s6 = inlined_call_operand.vmem [shape: f32[16,1], index: 6, kind: input, shape index: {}]
  %s7 = inlined_call_operand.hbm [shape: f32[2,16,16], index: 7, kind: output, shape index: {}]
  %s8 = sld [smem:[#allocation0]]
  $region61: #{carafe1d_decoder_forward.1} parent=0
    _
  %s10 = ssub.s32 1, %s8
  %s11 = scalar_select 0, %s10, %s8
  $region1: #{carafe1d_decoder_forward.1} parent=0
    #allocation7 [shape = 'u8[16384]{0}', space=vmem, size = 0x4000, scoped, tag = 'output window, operand 0']
    #allocation8 [shape = 's32[2]{0}', space=sflag, size = 0x8, scoped, tag = 'scoped memory for carafe1d_decoder_forward.1']
    %12 = vsyncpa [#allocation8], 0
    %s13 = scalar_lea.sflag [#allocation8], 1
    %14 = vsyncpa %s13, 0
    loop: start=0, step=1, limit=4
    $region2: #{carafe1d_decoder_forward.1} parent=1 // loop_pre_header
      _
    $region3: #{carafe1d_decoder_forward.1} parent=1 // loop_header
      %s16 = sphi 0, %s20
      %p17 = scmp.ge.s32.totalorder %s16, 4
      %s26 = sphi 0, %s28
      %s29 = sphi 0, %s26
      %s30 = sphi 0, %s29
      %s46 = sphi 0, %s30
      %s52 = sphi 0, %s54
      %s55 = sphi 0, %s52
      %s56 = sphi 0, %s55
      %s72 = sphi 0, %s56
      %s76 = sphi 0, %s76
      %s78 = sphi 0, %s76
      %s79 = sphi 0, %s78
      %s93 = sphi 0, %s79
      %s97 = sphi 0, %s97
      %s99 = sphi 0, %s97
      %s100 = sphi 0, %s99
      %s114 = sphi 0, %s100
      %s118 = sphi 0, %s118
      %s120 = sphi 0, %s118
      %s121 = sphi 0, %s120
      %s135 = sphi 0, %s121
      %s139 = sphi 0, %s139
      %s141 = sphi 0, %s139
      %s142 = sphi 0, %s141
      %s156 = sphi 0, %s142
      %s160 = sphi 0, %s160
      %s162 = sphi 0, %s160
      %s163 = sphi 0, %s162
      %s177 = sphi 0, %s163
      %s183 = sphi 0, %s185
      %s186 = sphi 0, %s183
      %s187 = sphi 0, %s186
      %s203 = sphi 0, %s187
    $region4: #{carafe1d_decoder_forward.1} parent=1 // loop_header_branch
      %19 = sbr.rel (%p17) target = $region8
    $region5: #{carafe1d_decoder_forward.1} parent=1 // loop_body
      %s21 = ssub.s32 %s16, 1
      %s22 = ssub.s32 %s16, 2
      %s23 = sadd.s32 %s16, 1
      %s24 = ssub.s32 %s16, %s23
      %p25 = scmp.eq.s32.totalorder %s24, 0
      %s27 = sadd.s32 %s26, 1
      %s28 = scalar_select %p25, %s26, %s27
      %p31 = pneg %p25
      %p32 = scmp.eq.s32.totalorder %s16, 1
      %p33 = por %p31, %p32
      %p34 = scmp.ne.s32.totalorder %s26, %s29
      %p35 = scmp.eq.s32.totalorder %s16, 0
      %p36 = por %p34, %p35
      %p37 = scmp.ne.s32.totalorder %s26, %s29
      %p38 = scmp.eq.s32.totalorder %s21, 1
      %p39 = por %p37, %p38
      %p40 = scmp.ne.s32.totalorder %s29, %s30
      %p41 = scmp.eq.s32.totalorder %s21, 0
      %p42 = por %p40, %p41
      %p43 = scmp.ne.s32.totalorder %s29, %s30
      %p44 = scmp.eq.s32.totalorder %s22, 1
      %p45 = por %p43, %p44
      %p47 = scmp.ne.s32.totalorder %s30, %s46
      %p48 = scmp.eq.s32.totalorder %s22, 0
      %p49 = por %p47, %p48
      %s50 = ssub.s32 %s16, %s23
      %p51 = scmp.eq.s32.totalorder %s50, 0
      %s53 = sadd.s32 %s52, 1
      %s54 = scalar_select %p51, %s52, %s53
      %p57 = pneg %p51
      %p58 = scmp.eq.s32.totalorder %s16, 1
      %p59 = por %p57, %p58
      %p60 = scmp.ne.s32.totalorder %s52, %s55
      %p61 = scmp.eq.s32.totalorder %s16, 0
      %p62 = por %p60, %p61
      %p63 = scmp.ne.s32.totalorder %s52, %s55
      %p64 = scmp.eq.s32.totalorder %s21, 1
      %p65 = por %p63, %p64
      %p66 = scmp.ne.s32.totalorder %s55, %s56
      %p67 = scmp.eq.s32.totalorder %s21, 0
      %p68 = por %p66, %p67
      %p69 = scmp.ne.s32.totalorder %s55, %s56
      %p70 = scmp.eq.s32.totalorder %s22, 1
      %p71 = por %p69, %p70
      %p73 = scmp.ne.s32.totalorder %s56, %s72
      %p74 = scmp.eq.s32.totalorder %s22, 0
      %p75 = por %p73, %p74
      %s77 = sadd.s32 %s76, 1
      %p80 = scmp.eq.s32.totalorder %s16, 1
      %p81 = scmp.ne.s32.totalorder %s76, %s78
      %p82 = scmp.eq.s32.totalorder %s16, 0
      %p83 = por %p81, %p82
      %p84 = scmp.ne.s32.totalorder %s76, %s78
      %p85 = scmp.eq.s32.totalorder %s21, 1
      %p86 = por %p84, %p85
      %p87 = scmp.ne.s32.totalorder %s78, %s79
      %p88 = scmp.eq.s32.totalorder %s21, 0
      %p89 = por %p87, %p88
      %p90 = scmp.ne.s32.totalorder %s78, %s79
      %p91 = scmp.eq.s32.totalorder %s22, 1
      %p92 = por %p90, %p91
      %p94 = scmp.ne.s32.totalorder %s79, %s93
      %p95 = scmp.eq.s32.totalorder %s22, 0
      %p96 = por %p94, %p95
      %s98 = sadd.s32 %s97, 1
      %p101 = scmp.eq.s32.totalorder %s16, 1
      %p102 = scmp.ne.s32.totalorder %s97, %s99
      %p103 = scmp.eq.s32.totalorder %s16, 0
      %p104 = por %p102, %p103
      %p105 = scmp.ne.s32.totalorder %s97, %s99
      %p106 = scmp.eq.s32.totalorder %s21, 1
      %p107 = por %p105, %p106
      %p108 = scmp.ne.s32.totalorder %s99, %s100
      %p109 = scmp.eq.s32.totalorder %s21, 0
      %p110 = por %p108, %p109
      %p111 = scmp.ne.s32.totalorder %s99, %s100
      %p112 = scmp.eq.s32.totalorder %s22, 1
      %p113 = por %p111, %p112
      %p115 = scmp.ne.s32.totalorder %s100, %s114
      %p116 = scmp.eq.s32.totalorder %s22, 0
      %p117 = por %p115, %p116
      %s119 = sadd.s32 %s118, 1
      %p122 = scmp.eq.s32.totalorder %s16, 1
      %p123 = scmp.ne.s32.totalorder %s118, %s120
      %p124 = scmp.eq.s32.totalorder %s16, 0
      %p125 = por %p123, %p124
      %p126 = scmp.ne.s32.totalorder %s118, %s120
      %p127 = scmp.eq.s32.totalorder %s21, 1
      %p128 = por %p126, %p127
      %p129 = scmp.ne.s32.totalorder %s120, %s121
      %p130 = scmp.eq.s32.totalorder %s21, 0
      %p131 = por %p129, %p130
      %p132 = scmp.ne.s32.totalorder %s120, %s121
      %p133 = scmp.eq.s32.totalorder %s22, 1
      %p134 = por %p132, %p133
      %p136 = scmp.ne.s32.totalorder %s121, %s135
      %p137 = scmp.eq.s32.totalorder %s22, 0
      %p138 = por %p136, %p137
      %s140 = sadd.s32 %s139, 1
      %p143 = scmp.eq.s32.totalorder %s16, 1
      %p144 = scmp.ne.s32.totalorder %s139, %s141
      %p145 = scmp.eq.s32.totalorder %s16, 0
      %p146 = por %p144, %p145
      %p147 = scmp.ne.s32.totalorder %s139, %s141
      %p148 = scmp.eq.s32.totalorder %s21, 1
      %p149 = por %p147, %p148
      %p150 = scmp.ne.s32.totalorder %s141, %s142
      %p151 = scmp.eq.s32.totalorder %s21, 0
      %p152 = por %p150, %p151
      %p153 = scmp.ne.s32.totalorder %s141, %s142
      %p154 = scmp.eq.s32.totalorder %s22, 1
      %p155 = por %p153, %p154
      %p157 = scmp.ne.s32.totalorder %s142, %s156
      %p158 = scmp.eq.s32.totalorder %s22, 0
      %p159 = por %p157, %p158
      %s161 = sadd.s32 %s160, 1
      %p164 = scmp.eq.s32.totalorder %s16, 1
      %p165 = scmp.ne.s32.totalorder %s160, %s162
      %p166 = scmp.eq.s32.totalorder %s16, 0
      %p167 = por %p165, %p166
      %p168 = scmp.ne.s32.totalorder %s160, %s162
      %p169 = scmp.eq.s32.totalorder %s21, 1
      %p170 = por %p168, %p169
      %p171 = scmp.ne.s32.totalorder %s162, %s163
      %p172 = scmp.eq.s32.totalorder %s21, 0
      %p173 = por %p171, %p172
      %p174 = scmp.ne.s32.totalorder %s162, %s163
      %p175 = scmp.eq.s32.totalorder %s22, 1
      %p176 = por %p174, %p175
      %p178 = scmp.ne.s32.totalorder %s163, %s177
      %p179 = scmp.eq.s32.totalorder %s22, 0
      %p180 = por %p178, %p179
      %s181 = ssub.s32 %s16, %s23
      %p182 = scmp.eq.s32.totalorder %s181, 0
      %s184 = sadd.s32 %s183, 1
      %s185 = scalar_select %p182, %s183, %s184
      %p188 = pneg %p182
      %p189 = scmp.eq.s32.totalorder %s16, 1
      %p190 = por %p188, %p189
      %p191 = scmp.ne.s32.totalorder %s183, %s186
      %p192 = scmp.eq.s32.totalorder %s16, 0
      %p193 = por %p191, %p192
      %p194 = scmp.ne.s32.totalorder %s183, %s186
      %p195 = scmp.eq.s32.totalorder %s21, 1
      %p196 = por %p194, %p195
      %p197 = scmp.ne.s32.totalorder %s186, %s187
      %p198 = scmp.eq.s32.totalorder %s21, 0
      %p199 = por %p197, %p198
      %p200 = scmp.ne.s32.totalorder %s186, %s187
      %p201 = scmp.eq.s32.totalorder %s22, 1
      %p202 = por %p200, %p201
      %p204 = scmp.ne.s32.totalorder %s187, %s203
      %p205 = scmp.eq.s32.totalorder %s22, 0
      %p206 = por %p204, %p205
      %p207 = scmp.le.s32.totalorder 1, %s16
      %p208 = scmp.lt.s32.totalorder %s16, 3
      %p209 = pnand %p207, %p208
      %p210 = pneg %p209
      // Predicated region
      $region9: #{carafe1d_decoder_forward.1} parent=5 // pred_check
        _
      $region10: #{carafe1d_decoder_forward.1} parent=5 // pred_check_branch
        %212 = sbr.rel (%p209) target = $region12
      $region11: #{carafe1d_decoder_forward.1} parent=5 // pred_region
        %s213 = ssub.s32 %s16, 1
        // Predicated region
        $region13: #{carafe1d_decoder_forward.1} parent=11 // pred_check
          %p214 = pneg %p89
        $region14: #{carafe1d_decoder_forward.1} parent=11 // pred_check_branch
          %216 = sbr.rel (%p214) target = $region16
        $region15: #{carafe1d_decoder_forward.1} parent=11 // pred_region
          _
        $region16: #{carafe1d_decoder_forward.1} parent=11 // pred_fallthru
          _
        // Predicated region
        $region17: #{carafe1d_decoder_forward.1} parent=11 // pred_check
          %p217 = pneg %p110
        $region18: #{carafe1d_decoder_forward.1} parent=11 // pred_check_branch
          %219 = sbr.rel (%p217) target = $region20
        $region19: #{carafe1d_decoder_forward.1} parent=11 // pred_region
          _
        $region20: #{carafe1d_decoder_forward.1} parent=11 // pred_fallthru
          _
        // Predicated region
        $region21: #{carafe1d_decoder_forward.1} parent=11 // pred_check
          %p220 = pneg %p131
        $region22: #{carafe1d_decoder_forward.1} parent=11 // pred_check_branch
          %222 = sbr.rel (%p220) target = $region24
        $region23: #{carafe1d_decoder_forward.1} parent=11 // pred_region
          _
        $region24: #{carafe1d_decoder_forward.1} parent=11 // pred_fallthru
          _
        // Predicated region
        $region25: #{carafe1d_decoder_forward.1} parent=11 // pred_check
          %p223 = pneg %p152
        $region26: #{carafe1d_decoder_forward.1} parent=11 // pred_check_branch
          %225 = sbr.rel (%p223) target = $region28
        $region27: #{carafe1d_decoder_forward.1} parent=11 // pred_region
          _
        $region28: #{carafe1d_decoder_forward.1} parent=11 // pred_fallthru
          _
        // Predicated region
        $region29: #{carafe1d_decoder_forward.1} parent=11 // pred_check
          %p226 = pneg %p173
        $region30: #{carafe1d_decoder_forward.1} parent=11 // pred_check_branch
          %228 = sbr.rel (%p226) target = $region32
        $region31: #{carafe1d_decoder_forward.1} parent=11 // pred_region
          _
        $region32: #{carafe1d_decoder_forward.1} parent=11 // pred_fallthru
          _
      $region12: #{carafe1d_decoder_forward.1} parent=5 // pred_fallthru
        _
      %p229 = scmp.lt.s32.totalorder %s16, 2
      // Predicated region
      $region33: #{carafe1d_decoder_forward.1} parent=5 // pred_check
        %p230 = pneg %p229
      $region34: #{carafe1d_decoder_forward.1} parent=5 // pred_check_branch
        %232 = sbr.rel (%p230) target = $region36
      $region35: #{carafe1d_decoder_forward.1} parent=5 // pred_region
        // Predicated region
        $region37: #{carafe1d_decoder_forward.1} parent=35 // pred_check
          %p233 = pneg %p36
        $region38: #{carafe1d_decoder_forward.1} parent=35 // pred_check_branch
          %235 = sbr.rel (%p233) target = $region40
        $region39: #{carafe1d_decoder_forward.1} parent=35 // pred_region
          %p236 = scmp.lt.s32.totalorder %s16, 1
          %s237 = scalar_select %p236, %s16, 1
          %s238 = smul.addr %s237, 4
          %s239 = scalar_lea.vmem %s0, %s238
        $region40: #{carafe1d_decoder_forward.1} parent=35 // pred_fallthru
          _
        // Predicated region
        $region41: #{carafe1d_decoder_forward.1} parent=35 // pred_check
          %p240 = pneg %p62
        $region42: #{carafe1d_decoder_forward.1} parent=35 // pred_check_branch
          %242 = sbr.rel (%p240) target = $region44
        $region43: #{carafe1d_decoder_forward.1} parent=35 // pred_region
          %p243 = scmp.lt.s32.totalorder %s16, 1
          %s244 = scalar_select %p243, %s16, 1
          %s245 = smul.addr %s244, 4
          %s246 = scalar_lea.vmem %s1, %s245
        $region44: #{carafe1d_decoder_forward.1} parent=35 // pred_fallthru
          _
      $region36: #{carafe1d_decoder_forward.1} parent=5 // pred_fallthru
        _
      %p247 = scmp.le.s32.totalorder 1, %s16
      %p248 = scmp.lt.s32.totalorder %s16, 3
      %p249 = pnand %p247, %p248
      %p250 = pneg %p249
      // Predicated region
      $region45: #{carafe1d_decoder_forward.1} parent=5 // pred_check
        _
      $region46: #{carafe1d_decoder_forward.1} parent=5 // pred_check_branch
        %252 = sbr.rel (%p249) target = $region48
      $region47: #{carafe1d_decoder_forward.1} parent=5 // pred_region
        %s253 = ssub.s32 %s16, 1
        %p254 = scmp.lt.s32.totalorder %s21, 1
        %s255 = scalar_select %p254, %s21, 1
        %s256 = smul.addr %s255, 4
        %s257 = scalar_lea.vmem %s0, %s256
        %p258 = pneg %p42
        %p259 = pneg %p39
        %p260 = scmp.lt.s32.totalorder %s21, 1
        %s261 = scalar_select %p260, %s21, 1
        %s262 = smul.addr %s261, 4
        %s263 = scalar_lea.vmem %s1, %s262
        %p264 = pneg %p68
        %p265 = pneg %p65
        %p266 = pneg %p89
        %p267 = pneg %p86
        %p268 = pneg %p110
        %p269 = pneg %p107
        %p270 = pneg %p131
        %p271 = pneg %p128
        %p272 = pneg %p152
        %p273 = pneg %p149
        %p274 = pneg %p173
        %p275 = pneg %p170
        %p276 = pneg %p199
        %p277 = pneg %p196
        %s278 = sand.u32 %s186, 1
        %s279 = scalar_lea.sflag [#allocation8], %s278
        %s280 = sand.u32 %s186, 1
        %s281 = smul.addr %s280, 16
        %s282 = scalar_lea.vmem [#allocation7], %s281
        %p283 = scmp.lt.s32.totalorder %s21, 1
        %s284 = scalar_select %p283, %s21, 1
        %s285 = smul.addr %s284, 4
        %s286 = scalar_lea.vmem %s0, %s285
        %p287 = scmp.lt.s32.totalorder %s21, 1
        %s288 = scalar_select %p287, %s21, 1
        %s289 = smul.addr %s288, 4
        %s290 = scalar_lea.vmem %s1, %s289
        %v292 = vld [vmem:[%s286] sm:$0xf]
        %vm293 = vcmask 125952
        %294 = vst.msk [vmem:[#allocation4] sm:$0xf] %vm293, %v292
        %v295 = vld [vmem:[%s286] sm:$0xf]
        %297 = vrot.lane.b32.xlu0 %v295, 127
        %v298 = vpop.permute.xlu0 %297
        %300 = vst.msk [vmem:[#allocation4 + $0x4] sm:$0xf] %vm293, %v298
        %v301 = vld [vmem:[%s286] sm:$0xf]
        %303 = vrot.lane.b32.xlu0 %v301, 126
        %v304 = vpop.permute.xlu0 %303
        %306 = vst.msk [vmem:[#allocation4 + $0x8] sm:$0xf] %vm293, %v304
        %v307 = vld [vmem:[%s286] sm:$0xf]
        %309 = vrot.lane.b32.xlu0 %v307, 125
        %v310 = vpop.permute.xlu0 %309
        %312 = vst.msk [vmem:[#allocation4 + $0xc] sm:$0xf] %vm293, %v310
        %v313 = vld [vmem:[%s286] sm:$0xf]
        %315 = vrot.lane.b32.xlu0 %v313, 124
        %v316 = vpop.permute.xlu0 %315
        %318 = vst.msk [vmem:[#allocation4 + $0x10] sm:$0xf] %vm293, %v316
        %v319 = vld [vmem:[%s286] sm:$0xf]
        %321 = vrot.lane.b32.xlu0 %v319, 123
        %v322 = vpop.permute.xlu0 %321
        %324 = vst.msk [vmem:[#allocation4 + $0x14] sm:$0xf] %vm293, %v322
        %v325 = vld [vmem:[%s2] sm:$0x3]
        %v326 = vld [vmem:[#allocation4] sm:$0xf]
        %v327 = vld [vmem:[#allocation4 + $0x4] sm:$0xf]
        %v328 = vld [vmem:[#allocation4 + $0x8] sm:$0xf]
        %v329 = vld [vmem:[#allocation4 + $0xc] sm:$0xf]
        %v330 = vld [vmem:[#allocation4 + $0x10] sm:$0xf]
        %v331 = vld [vmem:[#allocation4 + $0x14] sm:$0xf]
        %v338 = vunpack.c.l.b16 %v326
        %v339 = vunpack.c.l.b16 %v327
        %v340 = vunpack.c.l.b16 %v328
        %v341 = vunpack.c.l.b16 %v329
        %v342 = vunpack.c.l.b16 %v330
        %v343 = vunpack.c.l.b16 %v331
        %v344 = vpack.c.b16 %v339, %v338
        %v345 = vpack.c.b16 %v341, %v340
        %v346 = vpack.c.b16 %v343, %v342
        %vm350 = vcmask 392192
        %v352 = vsel %vm350, %v325, 0
        %354 = vmatpush.bf16.msra.mxu0 0
        %355 = vmatpush.bf16.msra.mxu0 0
        %356 = vmatpush.bf16.msra.mxu0 0
        %357 = vmatpush.bf16.msra.mxu0 0
        %358 = vmatpush.bf16.msra.mxu0 0
        %359 = vmatpush.bf16.msra.mxu0 %v346
        %360 = vmatpush.bf16.msra.mxu0 %v345
        %361 = vmatpush.bf16.msra.mxu0 %v344
        %362 = vmatmul.bf16.gmra.mxu0 %v352
        %v363 = vpop.f32.mrf.mxu0
        %v364 = vadd.f32 0.0, %v363
        %v365 = vpop.f32.mrf.mxu0
        %366 = vdwg.mxu0
        %vm367 = vcmask 9216
        %368 = vst.msk [vmem:[#allocation2] sm:$0x3] %vm367, 0
        %vm369 = vcmask 156816
        %370 = vst.msk [vmem:[#allocation2] sm:$0x3] %vm369, 0
        %v371 = vld [vmem:[%s290] sm:$0xf]
        %v372 = vpack.c.bf16 %v371, %v371
        %374 = vrot.lane.b32.xlu0 %v372, 2
        %v375 = vpop.permute.xlu0 %374
        %vm377 = vcmask 140304
        %378 = vst.msk [vmem:[#allocation2] sm:$0x3] %vm377, %v375
        %vm379 = vcmask 11266
        %380 = vst.msk [vmem:[#allocation2] sm:$0xc] %vm379, 0
        %vm381 = vcmask 158866
        %382 = vst.msk [vmem:[#allocation2] sm:$0xc] %vm381, 0
        %v383 = vpack.c.bf16 %v364, %v364
        %v385 = vrot.slane %v383, 6
        %386 = vrot.lane.b32.xlu0 %v385, 2
        %v387 = vpop.permute.xlu0 %386
        %vm389 = vcmask 142354
        %390 = vst.msk [vmem:[#allocation2] sm:$0xc] %vm389, %v387
        %v391 = vld [vmem:[#allocation2] sm:$0xf]
        %392 = vst.msk [vmem:[#allocation5] sm:$0xf] %vm293, %v391
        %v393 = vld [vmem:[#allocation2] sm:$0xf]
        %395 = vrot.lane.b32.xlu0 %v393, 127
        %v396 = vpop.permute.xlu0 %395
        %398 = vst.msk [vmem:[#allocation5 + $0x4] sm:$0xf] %vm293, %v396
        %v399 = vld [vmem:[#allocation2] sm:$0xf]
        %401 = vrot.lane.b32.xlu0 %v399, 126
        %v402 = vpop.permute.xlu0 %401
        %404 = vst.msk [vmem:[#allocation5 + $0x8] sm:$0xf] %vm293, %v402
        %v405 = vld [vmem:[#allocation2] sm:$0xf]
        %407 = vrot.lane.b32.xlu0 %v405, 125
        %v408 = vpop.permute.xlu0 %407
        %410 = vst.msk [vmem:[#allocation5 + $0xc] sm:$0xf] %vm293, %v408
        %v411 = vld [vmem:[#allocation2] sm:$0xf]
        %413 = vrot.lane.b32.xlu0 %v411, 124
        %v414 = vpop.permute.xlu0 %413
        %416 = vst.msk [vmem:[#allocation5 + $0x10] sm:$0xf] %vm293, %v414
        %v417 = vld [vmem:[%s3] sm:$0xf]
        %v418 = vld [vmem:[%s3 + $0x4] sm:$0xf]
        %v419 = vld [vmem:[#allocation5] sm:$0xf]
        %v420 = vld [vmem:[#allocation5 + $0x4] sm:$0xf]
        %v421 = vld [vmem:[#allocation5 + $0x8] sm:$0xf]
        %v422 = vld [vmem:[#allocation5 + $0xc] sm:$0xf]
        %v423 = vld [vmem:[#allocation5 + $0x10] sm:$0xf]
        %v424 = vld [vmem:[%s4] sm:$0xff]
        %v425 = vld [vmem:[%s4 + $0x8] sm:$0xff]
        %427 = vset.pattern.permute.xlu0 0
        %428 = vperm.xlu0 %427, %v424
        %v429 = vpop.permute.xlu0 %428
        %432 = vset.pattern.permute.xlu0 0
        %433 = vperm.xlu0 %432, %v425
        %v434 = vpop.permute.xlu0 %433
        %v438 = vunpack.c.l.b16 %v417
        %v439 = vunpack.c.l.b16 %v418
        %v440 = vpack.c.b16 %v439, %v438
        %v446 = vunpack.c.l.b16 %v419
        %v447 = vunpack.c.l.b16 %v420
        %v448 = vunpack.c.l.b16 %v421
        %v449 = vunpack.c.l.b16 %v422
        %v450 = vunpack.c.l.b16 %v423
        %v451 = vpack.c.b16 %v447, %v446
        %v452 = vpack.c.b16 %v449, %v448
        %v453 = vpack.c.b16 %v450, %v450
        %vm456 = vcmask 326656
        %v458 = vsel %vm456, %v440, 0
        %vm460 = vcmask 1043456
        %v462 = vsel %vm460, %v453, 0
        %464 = vmatpush.bf16.msra.mxu0 0
        %465 = vmatpush.bf16.msra.mxu0 0
        %466 = vmatpush.bf16.msra.mxu0 0
        %467 = vmatpush.bf16.msra.mxu0 0
        %468 = vmatpush.bf16.msra.mxu0 0
        %469 = vmatpush.bf16.msra.mxu0 %v462
        %470 = vmatpush.bf16.msra.mxu0 %v452
        %471 = vmatpush.bf16.msra.mxu0 %v451
        %472 = vmatmul.bf16.gmra.mxu0 %v458
        %v473 = vpop.f32.mrf.mxu0
        %v474 = vadd.f32 %v429, %v473
        %v475 = vpop.f32.mrf.mxu0
        %v476 = vadd.f32 %v434, %v475
        %477 = vdwg.mxu0
        %v478 = vmul.f32 %v474, %v474
        %v479 = vmul.f32 %v476, %v476
        %v480 = vmul.f32 %v474, %v478
        %v481 = vmul.f32 %v476, %v479
        %v482 = vmul.f32 %v480, 0.044715
        %v483 = vmul.f32 %v481, 0.044715
        %v484 = vadd.f32 %v474, %v482
        %v485 = vadd.f32 %v476, %v483
        %v486 = vmul.f32 %v484, 0.7978846
        %v487 = vmul.f32 %v485, 0.7978846
        %v488 = vtanh.pop %v486
        %v489 = vtanh.pop %v487
        %v490 = vadd.f32 %v488, 1.0
        %v491 = vadd.f32 %v489, 1.0
        %v492 = vmul.f32 %v490, 0.5
        %v493 = vmul.f32 %v491, 0.5
        %v494 = vmul.f32 %v474, %v492
        %v495 = vmul.f32 %v476, %v493
        %vm496 = vcmask 11264
        %497 = vst.msk [vmem:[#allocation3] sm:$0xf] %vm496, 0
        %498 = vst.msk [vmem:[#allocation3 + $0x4] sm:$0xf] %vm496, 0
        %vm499 = vcmask 158864
        %500 = vst.msk [vmem:[#allocation3] sm:$0xf] %vm499, 0
        %501 = vst.msk [vmem:[#allocation3 + $0x4] sm:$0xf] %vm499, 0
        %v502 = vpack.c.bf16 %v494, %v494
        %v503 = vpack.c.bf16 %v495, %v495
        %506 = vrot.lane.b32.xlu0 %v502, 2
        %v507 = vpop.permute.xlu0 %506
        %508 = vrot.lane.b32.xlu0 %v503, 2
        %v509 = vpop.permute.xlu0 %508
        %vm512 = vcmask 142352
        %513 = vst.msk [vmem:[#allocation3] sm:$0xf] %vm512, %v507
        %514 = vst.msk [vmem:[#allocation3 + $0x4] sm:$0xf] %vm512, %v509
        %v515 = vld [vmem:[#allocation3] sm:$0xf]
        %v516 = vld [vmem:[#allocation3 + $0x4] sm:$0xf]
        %517 = vst.msk [vmem:[#allocation6] sm:$0xf] %vm293, %v515
        %518 = vst.msk [vmem:[#allocation6 + $0x4] sm:$0xf] %vm293, %v516
        %v519 = vld [vmem:[#allocation3] sm:$0xf]
        %v520 = vld [vmem:[#allocation3 + $0x4] sm:$0xf]
        %523 = vrot.lane.b32.xlu0 %v519, 127
        %v524 = vpop.permute.xlu0 %523
        %525 = vrot.lane.b32.xlu0 %v520, 127
        %v526 = vpop.permute.xlu0 %525
        %529 = vst.msk [vmem:[#allocation6 + $0x8] sm:$0xf] %vm293, %v524
        %530 = vst.msk [vmem:[#allocation6 + $0xc] sm:$0xf] %vm293, %v526
        %v531 = vld [vmem:[#allocation3] sm:$0xf]
        %v532 = vld [vmem:[#allocation3 + $0x4] sm:$0xf]
        %535 = vrot.lane.b32.xlu0 %v531, 126
        %v536 = vpop.permute.xlu0 %535
        %537 = vrot.lane.b32.xlu0 %v532, 126
        %v538 = vpop.permute.xlu0 %537
        %541 = vst.msk [vmem:[#allocation6 + $0x10] sm:$0xf] %vm293, %v536
        %542 = vst.msk [vmem:[#allocation6 + $0x14] sm:$0xf] %vm293, %v538
        %v543 = vld [vmem:[#allocation3] sm:$0xf]
        %v544 = vld [vmem:[#allocation3 + $0x4] sm:$0xf]
        %547 = vrot.lane.b32.xlu0 %v543, 125
        %v548 = vpop.permute.xlu0 %547
        %549 = vrot.lane.b32.xlu0 %v544, 125
        %v550 = vpop.permute.xlu0 %549
        %553 = vst.msk [vmem:[#allocation6 + $0x18] sm:$0xf] %vm293, %v548
        %554 = vst.msk [vmem:[#allocation6 + $0x1c] sm:$0xf] %vm293, %v550
        %v555 = vld [vmem:[#allocation3] sm:$0xf]
        %v556 = vld [vmem:[#allocation3 + $0x4] sm:$0xf]
        %559 = vrot.lane.b32.xlu0 %v555, 124
        %v560 = vpop.permute.xlu0 %559
        %561 = vrot.lane.b32.xlu0 %v556, 124
        %v562 = vpop.permute.xlu0 %561
        %565 = vst.msk [vmem:[#allocation6 + $0x20] sm:$0xf] %vm293, %v560
        %566 = vst.msk [vmem:[#allocation6 + $0x24] sm:$0xf] %vm293, %v562
        %v567 = vld [vmem:[%s5] sm:$0xf]
        %v568 = vld [vmem:[%s5 + $0x4] sm:$0xf]
        %v569 = vld [vmem:[#allocation6] sm:$0xf]
        %v570 = vld [vmem:[#allocation6 + $0x4] sm:$0xf]
        %v571 = vld [vmem:[#allocation6 + $0x8] sm:$0xf]
        %v572 = vld [vmem:[#allocation6 + $0xc] sm:$0xf]
        %v573 = vld [vmem:[#allocation6 + $0x10] sm:$0xf]
        %v574 = vld [vmem:[#allocation6 + $0x14] sm:$0xf]
        %v575 = vld [vmem:[#allocation6 + $0x18] sm:$0xf]
        %v576 = vld [vmem:[#allocation6 + $0x1c] sm:$0xf]
        %v577 = vld [vmem:[#allocation6 + $0x20] sm:$0xf]
        %v578 = vld [vmem:[#allocation6 + $0x24] sm:$0xf]
        %v579 = vld [vmem:[%s6] sm:$0xff]
        %v580 = vld [vmem:[%s6 + $0x8] sm:$0xff]
        %582 = vset.pattern.permute.xlu0 0
        %583 = vperm.xlu0 %582, %v579
        %v584 = vpop.permute.xlu0 %583
        %587 = vset.pattern.permute.xlu0 0
        %588 = vperm.xlu0 %587, %v580
        %v589 = vpop.permute.xlu0 %588
        %v593 = vunpack.c.l.b16 %v567
        %v594 = vunpack.c.l.b16 %v568
        %v595 = vpack.c.b16 %v594, %v593
        %v606 = vunpack.c.l.b16 %v569
        %v607 = vunpack.c.l.b16 %v570
        %v608 = vunpack.c.l.b16 %v571
        %v609 = vunpack.c.l.b16 %v572
        %v610 = vunpack.c.l.b16 %v573
        %v611 = vunpack.c.l.b16 %v574
        %v612 = vunpack.c.l.b16 %v575
        %v613 = vunpack.c.l.b16 %v576
        %v614 = vunpack.c.l.b16 %v577
        %v615 = vunpack.c.l.b16 %v578
        %v616 = vpack.c.b16 %v607, %v606
        %v617 = vpack.c.b16 %v609, %v608
        %v618 = vpack.c.b16 %v611, %v610
        %v619 = vpack.c.b16 %v613, %v612
        %v620 = vpack.c.b16 %v615, %v614
        %vm626 = vcmask 654336
        %v628 = vsel %vm626, %v595, 0
        %630 = vmatpush.bf16.msra.mxu0 0
        %631 = vmatpush.bf16.msra.mxu0 0
        %632 = vmatpush.bf16.msra.mxu0 0
        %633 = vmatpush.bf16.msra.mxu0 %v620
        %634 = vmatpush.bf16.msra.mxu0 %v619
        %635 = vmatpush.bf16.msra.mxu0 %v618
        %636 = vmatpush.bf16.msra.mxu0 %v617
        %637 = vmatpush.bf16.msra.mxu0 %v616
        %638 = vmatmul.bf16.gmra.mxu0 %v628
        %v639 = vpop.f32.mrf.mxu0
        %v640 = vadd.f32 %v584, %v639
        %v641 = vpop.f32.mrf.mxu0
        %v642 = vadd.f32 %v589, %v641
        %643 = vdwg.mxu0
        %v644 = vmul.f32 %v640, %v640
        %v645 = vmul.f32 %v642, %v642
        %v646 = vmul.f32 %v640, %v644
        %v647 = vmul.f32 %v642, %v645
        %v648 = vmul.f32 %v646, 0.044715
        %v649 = vmul.f32 %v647, 0.044715
        %v650 = vadd.f32 %v640, %v648
        %v651 = vadd.f32 %v642, %v649
        %v652 = vmul.f32 %v650, 0.7978846
        %v653 = vmul.f32 %v651, 0.7978846
        %v654 = vtanh.pop %v652
        %v655 = vtanh.pop %v653
        %v656 = vadd.f32 %v654, 1.0
        %v657 = vadd.f32 %v655, 1.0
        %v658 = vmul.f32 %v656, 0.5
        %v659 = vmul.f32 %v657, 0.5
        %v660 = vmul.f32 %v640, %v658
        %v661 = vmul.f32 %v642, %v659
        %vm662 = vcmask 130048
        %663 = vst.msk [vmem:[%s282] sm:$0xff] %vm662, %v660
        %664 = vst.msk [vmem:[%s282 + $0x8] sm:$0xff] %vm662, %v661
        %s665 = sand.u32 %s186, 1
        %s666 = scalar_lea.sflag [#allocation8], %s665
        %s667 = sand.u32 %s186, 1
        %s668 = smul.addr %s667, 16
        %s669 = scalar_lea.vmem [#allocation7], %s668
        // Predicated region
        $region49: #{carafe1d_decoder_forward.1} parent=47 // pred_check
          %p670 = pneg %p196
        $region50: #{carafe1d_decoder_forward.1} parent=47 // pred_check_branch
          %672 = sbr.rel (%p670) target = $region52
        $region51: #{carafe1d_decoder_forward.1} parent=47 // pred_region
          %674 = vsyncadd %s666, 0
          %s675 = smul.addr %s21, 2
          %s676 = smul.addr %s675, 8
          %s677 = scalar_lea.hbm %s7, %s676
          %s678 = sshll.u32 %s669, 4
          %s679 = int_to_ptr.vmem [resolvable:$true] %s678
          %s680 = sshll.u32 %s677, 4
          %s681 = int_to_ptr.hbm [resolvable:$true] %s680
          %686 = dma.vmem_to_hbm [thread:$0]  %s679, 256, %s681, %s666, 128, 128, 8
        $region52: #{carafe1d_decoder_forward.1} parent=47 // pred_fallthru
          _
      $region48: #{carafe1d_decoder_forward.1} parent=5 // pred_fallthru
        _
      %p687 = scmp.le.s32.totalorder 2, %s16
      // Predicated region
      $region53: #{carafe1d_decoder_forward.1} parent=5 // pred_check
        %p688 = pneg %p687
      $region54: #{carafe1d_decoder_forward.1} parent=5 // pred_check_branch
        %690 = sbr.rel (%p688) target = $region56
      $region55: #{carafe1d_decoder_forward.1} parent=5 // pred_region
        %s691 = ssub.s32 %s16, 2
        // Predicated region
        $region57: #{carafe1d_decoder_forward.1} parent=55 // pred_check
          %p692 = pneg %p202
        $region58: #{carafe1d_decoder_forward.1} parent=55 // pred_check_branch
          %694 = sbr.rel (%p692) target = $region60
        $region59: #{carafe1d_decoder_forward.1} parent=55 // pred_region
          %s695 = sand.u32 %s187, 1
          %s696 = scalar_lea.sflag [#allocation8], %s695
          %s697 = sand.u32 %s187, 1
          %s698 = smul.addr %s697, 16
          %s699 = scalar_lea.vmem [#allocation7], %s698
          %701 = dma.done %s696, 256
        $region60: #{carafe1d_decoder_forward.1} parent=55 // pred_fallthru
          _
      $region56: #{carafe1d_decoder_forward.1} parent=5 // pred_fallthru
        _
    $region6: #{carafe1d_decoder_forward.1} parent=1 // loop_footer
      %s20 = sadd.s32 1, %s16
    $region7: #{carafe1d_decoder_forward.1} parent=1 // loop_footer_branch
      %15 = sbr.rel target = $region3
    $region8: #{carafe1d_decoder_forward.1} parent=1 // loop_exit
      _
    %702 = vsyncpa [#allocation8], 1
    %s703 = scalar_lea.sflag [#allocation8], 1
    %704 = vsyncpa %s703, 1

</llo_original>
